<compile_context>
chip_gen: v7x
topology: tpu7x:2x2x1
jax: 0.10.0
libtpu: 0.0.40
codegen_flags: <defaults>
</compile_context>

<pallas_src>
import functools

import jax
import jax.numpy as jnp
from jax.experimental import pallas as pl
from jax.experimental.pallas import tpu as pltpu

_LANES = 128


def _point_metrics_kernel(pred_ref, tgt_ref, out_ref, acc_ref, *,
                          n_elems, pad_count, tile_rows):
    # pred_ref: [tile_rows, 128] (native dtype)   tgt_ref: [tile_rows, 128] f32
    # out_ref : [1, 2] f32 in SMEM                acc_ref: [2, 8, 128] f32 VMEM
    i = pl.program_id(0)

    @pl.when(i == 0)
    def _():
        acc_ref[...] = jnp.zeros_like(acc_ref)

    pred = pred_ref[...].astype(jnp.float32)
    tgt = tgt_ref[...]
    diff = pred - tgt                         # shared by both metrics
    eq = (diff == 0.0).astype(jnp.float32)    # exact: diff==0  <=>  pred==tgt
    ad = jnp.abs(diff)

    # Fold [tile_rows,128] -> [8,128] with elementwise (VPU-only) adds: the
    # leading-axis split groups whole (8,128) vregs, so no cross-lane work here.
    g = tile_rows // 8
    eq8 = jnp.sum(eq.reshape(g, 8, _LANES), axis=0)
    ad8 = jnp.sum(ad.reshape(g, 8, _LANES), axis=0)
    acc_ref[0] = acc_ref[0] + eq8
    acc_ref[1] = acc_ref[1] + ad8

    # Single final cross-lane reduce + normalization on the last grid step.
    @pl.when(i == pl.num_programs(0) - 1)
    def _():
        inv_n = jnp.float32(1.0 / n_elems)
        eq_total = jnp.sum(acc_ref[0]) - jnp.float32(pad_count)
        ad_total = jnp.sum(acc_ref[1])
        out_ref[0, 0] = eq_total * inv_n
        out_ref[0, 1] = ad_total * inv_n


def point_metrics(targets, predictions, *, max_tile_rows=512):
    """targets: [B, A]; predictions: [B, S+1, A] -> {'accuracy', 'x_mae'} scalars."""
    B, S1, A = predictions.shape
    n = B * S1 * A

    # torch .long(): truncate toward zero (int32 here), back to f32 -- done on
    # the tiny [B, A] targets array only (negligible cost, exact in f32).
    tgt_f = targets.astype(jnp.int32).astype(jnp.float32)

    # Lane-dense slab geometry.
    rows = -(-n // _LANES)                                   # ceil(n / 128)
    tile_rows = max(8, min(max_tile_rows, ((rows + 7) // 8) * 8))
    rows_padded = ((rows + tile_rows - 1) // tile_rows) * tile_rows
    n_padded = rows_padded * _LANES
    pad = n_padded - n                                       # zero-pad both slabs

    # Predictions kept in native dtype (cast to f32 happens inside the kernel).
    pred_slab = jnp.pad(predictions.reshape(-1), (0, pad)).reshape(
        rows_padded, _LANES)
    tgt_slab = jnp.pad(
        jnp.broadcast_to(tgt_f[:, None, :], (B, S1, A)).reshape(-1), (0, pad)
    ).reshape(rows_padded, _LANES)

    grid = (rows_padded // tile_rows,)
    kernel = functools.partial(_point_metrics_kernel, n_elems=n,
                               pad_count=pad, tile_rows=tile_rows)

    out = pl.pallas_call(
        kernel,
        out_shape=jax.ShapeDtypeStruct((1, 2), jnp.float32),
        grid=grid,
        in_specs=[
            pl.BlockSpec((tile_rows, _LANES), lambda i: (i, 0)),
            pl.BlockSpec((tile_rows, _LANES), lambda i: (i, 0)),
        ],
        out_specs=pl.BlockSpec(memory_space=pltpu.MemorySpace.SMEM),
        scratch_shapes=[pltpu.VMEM((2, 8, _LANES), jnp.float32)],
        compiler_params=pltpu.CompilerParams(
            dimension_semantics=("arbitrary",),   # reduction axis
            vmem_limit_bytes=32 * 1024 * 1024,    # safe on v7x's 64 MiB VMEM too
        ),
        cost_estimate=pl.CostEstimate(
            flops=5 * n_padded,
            transcendentals=0,
            bytes_accessed=(pred_slab.size * pred_slab.dtype.itemsize
                            + tgt_slab.size * 4 + 8),
        ),
    )(pred_slab, tgt_slab)

    return {"accuracy": out[0, 0], "x_mae": out[0, 1]}


if __name__ == "__main__":
    key = jax.random.PRNGKey(0)
    k1, k2 = jax.random.split(key)

    B, S, A = 2, 8, 4  # seq_len = 8 -> predictions have seq_len + 1 = 9 steps

    # Predictions: small integers + some exact matches so both metrics are
    # non-trivial. Targets: small floats whose .long() truncation matters.
    predictions = jnp.round(
        jax.random.uniform(k1, (B, S + 1, A), minval=0.0, maxval=4.0)
    ).astype(jnp.float32)
    targets = jax.random.uniform(k2, (B, A), minval=0.0, maxval=4.0).astype(
        jnp.float32)

    out = point_metrics(targets, predictions)
    out = jax.tree_util.tree_map(jax.block_until_ready, out)

    # Pure-JAX reference (same semantics as the PyTorch module).
    tgt_ref = targets.astype(jnp.int32).astype(jnp.float32)[:, None]
    ref_acc = (predictions == tgt_ref).astype(jnp.float32).mean()
    ref_mae = jnp.abs(predictions - tgt_ref).astype(jnp.float32).mean()
    assert jnp.allclose(out["accuracy"], ref_acc, atol=1e-6), (
        out["accuracy"], ref_acc)
    assert jnp.allclose(out["x_mae"], ref_mae, atol=1e-6), (
        out["x_mae"], ref_mae)

    print("KERNEL_OK")
</pallas_src>

<mosaic_0001>
module attributes {stable_mosaic.version = 11 : i64} {
  func.func @_point_metrics_kernel(%arg0: i32, %arg1: memref<8x128xf32, #tpu.memory_space<vmem>>, %arg2: memref<8x128xf32, #tpu.memory_space<vmem>>, %arg3: memref<1x2xf32, #tpu.memory_space<smem>>, %arg4: memref<2x8x128xf32, #tpu.memory_space<vmem>>) attributes {dimension_semantics = [#tpu.dimension_semantics<arbitrary>], iteration_bounds = array<i64: 1>, scalar_prefetch = 0 : i64, scratch_operands = 1 : i64, tpu.core_type = #tpu.core_type<tc>, window_params = [{transform_indices = @transform_0, window_bounds = array<i64: 8, 128>}, {transform_indices = @transform_1, window_bounds = array<i64: 8, 128>}, {transform_indices = @transform_2, window_bounds = array<i64: 1, 2>}]} {
    %c0_i32 = arith.constant 0 : i32
    %0 = arith.cmpi eq, %arg0, %c0_i32 : i32
    %1 = arith.extui %0 : i1 to i32
    %c0_i32_0 = arith.constant 0 : i32
    %2 = arith.cmpi ne, %1, %c0_i32_0 : i32
    scf.if %2 {
      %cst_19 = arith.constant 0.000000e+00 : f32
      %30 = vector.broadcast %cst_19 : f32 to vector<2x8x128xf32>
      %c0_20 = arith.constant 0 : index
      %c0_21 = arith.constant 0 : index
      %c0_22 = arith.constant 0 : index
      %31 = vector.load %arg4[%c0_20, %c0_21, %c0_22] : memref<2x8x128xf32, #tpu.memory_space<vmem>>, vector<2x8x128xf32>
      tpu.vector_store %arg4[%c0_20, %c0_21, %c0_22], %30 {strides = array<i32>} : memref<2x8x128xf32, #tpu.memory_space<vmem>>, vector<2x8x128xf32>,
    } else {
    }
    %c0 = arith.constant 0 : index
    %c0_1 = arith.constant 0 : index
    %3 = vector.load %arg1[%c0, %c0_1] : memref<8x128xf32, #tpu.memory_space<vmem>>, vector<8x128xf32>
    %c0_2 = arith.constant 0 : index
    %c0_3 = arith.constant 0 : index
    %4 = vector.load %arg2[%c0_2, %c0_3] : memref<8x128xf32, #tpu.memory_space<vmem>>, vector<8x128xf32>
    %5 = arith.subf %3, %4 : vector<8x128xf32>
    %cst = arith.constant 0.000000e+00 : f32
    %6 = vector.broadcast %cst : f32 to vector<8x128xf32>
    %7 = arith.cmpf oeq, %5, %6 : vector<8x128xf32>
    %8 = arith.extui %7 : vector<8x128xi1> to vector<8x128xi32>
    %9 = arith.sitofp %8 : vector<8x128xi32> to vector<8x128xf32>
    %10 = math.absf %5 : vector<8x128xf32>
    %11 = vector.shape_cast %9 : vector<8x128xf32> to vector<1x8x128xf32>
    %cst_4 = arith.constant dense<0.000000e+00> : vector<8x128xf32>
    %12 = vector.multi_reduction <add>, %11, %cst_4 [0] : vector<1x8x128xf32> to vector<8x128xf32>
    %13 = vector.shape_cast %10 : vector<8x128xf32> to vector<1x8x128xf32>
    %cst_5 = arith.constant dense<0.000000e+00> : vector<8x128xf32>
    %14 = vector.multi_reduction <add>, %13, %cst_5 [0] : vector<1x8x128xf32> to vector<8x128xf32>
    %c0_6 = arith.constant 0 : index
    %c0_7 = arith.constant 0 : index
    %c0_8 = arith.constant 0 : index
    %15 = vector.load %arg4[%c0_6, %c0_7, %c0_8] : memref<2x8x128xf32, #tpu.memory_space<vmem>>, vector<1x8x128xf32>
    %16 = vector.shape_cast %15 : vector<1x8x128xf32> to vector<8x128xf32>
    %17 = arith.addf %16, %12 : vector<8x128xf32>
    %c0_9 = arith.constant 0 : index
    %c0_10 = arith.constant 0 : index
    %c0_11 = arith.constant 0 : index
    %18 = vector.load %arg4[%c0_9, %c0_10, %c0_11] : memref<2x8x128xf32, #tpu.memory_space<vmem>>, vector<1x8x128xf32>
    %19 = vector.shape_cast %18 : vector<1x8x128xf32> to vector<8x128xf32>
    %20 = vector.shape_cast %17 : vector<8x128xf32> to vector<1x8x128xf32>
    tpu.vector_store %arg4[%c0_9, %c0_10, %c0_11], %20 {strides = array<i32>} : memref<2x8x128xf32, #tpu.memory_space<vmem>>, vector<1x8x128xf32>,
    %c1 = arith.constant 1 : index
    %c0_12 = arith.constant 0 : index
    %c0_13 = arith.constant 0 : index
    %21 = vector.load %arg4[%c1, %c0_12, %c0_13] : memref<2x8x128xf32, #tpu.memory_space<vmem>>, vector<1x8x128xf32>
    %22 = vector.shape_cast %21 : vector<1x8x128xf32> to vector<8x128xf32>
    %23 = arith.addf %22, %14 : vector<8x128xf32>
    %c1_14 = arith.constant 1 : index
    %c0_15 = arith.constant 0 : index
    %c0_16 = arith.constant 0 : index
    %24 = vector.load %arg4[%c1_14, %c0_15, %c0_16] : memref<2x8x128xf32, #tpu.memory_space<vmem>>, vector<1x8x128xf32>
    %25 = vector.shape_cast %24 : vector<1x8x128xf32> to vector<8x128xf32>
    %26 = vector.shape_cast %23 : vector<8x128xf32> to vector<1x8x128xf32>
    tpu.vector_store %arg4[%c1_14, %c0_15, %c0_16], %26 {strides = array<i32>} : memref<2x8x128xf32, #tpu.memory_space<vmem>>, vector<1x8x128xf32>,
    %c0_i32_17 = arith.constant 0 : i32
    %27 = arith.cmpi eq, %arg0, %c0_i32_17 : i32
    %28 = arith.extui %27 : i1 to i32
    %c0_i32_18 = arith.constant 0 : i32
    %29 = arith.cmpi ne, %28, %c0_i32_18 : i32
    scf.if %29 {
      %c0_19 = arith.constant 0 : index
      %c0_20 = arith.constant 0 : index
      %c0_21 = arith.constant 0 : index
      %30 = vector.load %arg4[%c0_19, %c0_20, %c0_21] : memref<2x8x128xf32, #tpu.memory_space<vmem>>, vector<1x8x128xf32>
      %31 = vector.shape_cast %30 : vector<1x8x128xf32> to vector<8x128xf32>
      %32 = vector.shape_cast %31 : vector<8x128xf32> to vector<1x8x128xf32>
      %cst_22 = arith.constant dense<0.000000e+00> : vector<1xf32>
      %33 = vector.multi_reduction <add>, %32, %cst_22 [1, 2] : vector<1x8x128xf32> to vector<1xf32>
      %34 = vector.shape_cast %33 : vector<1xf32> to vector<1x1x1xf32>
      %35 = vector.extract %34[0, 0, 0] : f32 from vector<1x1x1xf32>
      %cst_23 = arith.constant 9.520000e+02 : f32
      %36 = arith.subf %35, %cst_23 : f32
      %c1_24 = arith.constant 1 : index
      %c0_25 = arith.constant 0 : index
      %c0_26 = arith.constant 0 : index
      %37 = vector.load %arg4[%c1_24, %c0_25, %c0_26] : memref<2x8x128xf32, #tpu.memory_space<vmem>>, vector<1x8x128xf32>
      %38 = vector.shape_cast %37 : vector<1x8x128xf32> to vector<8x128xf32>
      %39 = vector.shape_cast %38 : vector<8x128xf32> to vector<1x8x128xf32>
      %cst_27 = arith.constant dense<0.000000e+00> : vector<1xf32>
      %40 = vector.multi_reduction <add>, %39, %cst_27 [1, 2] : vector<1x8x128xf32> to vector<1xf32>
      %41 = vector.shape_cast %40 : vector<1xf32> to vector<1x1x1xf32>
      %42 = vector.extract %41[0, 0, 0] : f32 from vector<1x1x1xf32>
      %cst_28 = arith.constant 0.013888889 : f32
      %43 = arith.mulf %36, %cst_28 : f32
      %c0_29 = arith.constant 0 : index
      %c0_30 = arith.constant 0 : index
      %44 = memref.load %arg3[%c0_29, %c0_30] : memref<1x2xf32, #tpu.memory_space<smem>>
      memref.store %43, %arg3[%c0_29, %c0_30] : memref<1x2xf32, #tpu.memory_space<smem>>
      %cst_31 = arith.constant 0.013888889 : f32
      %45 = arith.mulf %42, %cst_31 : f32
      %c0_32 = arith.constant 0 : index
      %c1_33 = arith.constant 1 : index
      %46 = memref.load %arg3[%c0_32, %c1_33] : memref<1x2xf32, #tpu.memory_space<smem>>
      memref.store %45, %arg3[%c0_32, %c1_33] : memref<1x2xf32, #tpu.memory_space<smem>>
    } else {
    }
    return
  }
  func.func @transform_0(%arg0: i32) -> (i32, i32) {
    %c0_i32 = arith.constant 0 : i32
    %c0_i32_0 = arith.constant 0 : i32
    return %arg0, %c0_i32 : i32, i32
  }
  func.func @transform_1(%arg0: i32) -> (i32, i32) {
    %c0_i32 = arith.constant 0 : i32
    %c0_i32_0 = arith.constant 0 : i32
    return %arg0, %c0_i32 : i32, i32
  }
  func.func @transform_2(%arg0: i32) -> (i32, i32) {
    %c0_i32 = arith.constant 0 : i32
    %c0_i32_0 = arith.constant 0 : i32
    %c0_i32_1 = arith.constant 0 : i32
    return %c0_i32, %c0_i32_0 : i32, i32
  }
}

</mosaic_0001>

<llo_original>
// kernel: tpu_custom_call.1
$region0: #{tpu_custom_call.1}
  #allocation0 [shape = 'u32[]', space=smem, size = 0x4, offset = 0x4, fixed_abs, tag = 'smem constant byte address 0x4 - core index']
  #allocation1 [shape = 'u32[144,128]{1,0:T(1,128)}', space=vmem, size = 0x12000, scoped, tag = 'internal scratch']
  #allocation2 [shape = 'f32[2,8,128]{2,1,0:T(8,128)}', space=vmem, size = 0x2000, scoped, tag = 'scratch operand']
  %s0 = inlined_call_operand.hbm [shape: f32[8,128], index: 0, kind: input, shape index: {}]
  %s1 = inlined_call_operand.hbm [shape: f32[8,128], index: 1, kind: input, shape index: {}]
  %s2 = inlined_call_operand.hbm [shape: f32[1,2], index: 2, kind: output, shape index: {}]
  %s3 = sld [smem:[#allocation0]]
  $region34: #{tpu_custom_call.1} parent=0
    _
  %s5 = ssub.s32 1, %s3
  %s6 = scalar_select 0, %s5, %s3
  $region1: #{tpu_custom_call.1} parent=0
    #allocation3 [shape = 'u8[4096]{0}', space=vmem, size = 0x1000, scoped, tag = 'input window, operand 0, single buffered']
    #allocation4 [shape = 's32[1]{0}', space=sflag, size = 0x4, scoped, tag = 'scoped memory for tpu_custom_call.1']
    #allocation5 [shape = 's32[1]{0}', space=sflag, size = 0x4, scoped, tag = 'scoped memory for tpu_custom_call.1']
    #allocation6 [shape = 'u8[4096]{0}', space=vmem, size = 0x1000, scoped, tag = 'input window, operand 1, single buffered']
    #allocation7 [shape = 's32[1]{0}', space=sflag, size = 0x4, scoped, tag = 'scoped memory for tpu_custom_call.1']
    #allocation8 [shape = 'u8[512]{0}', space=smem, size = 0x200, scoped, tag = 'output window, operand 0, single buffered']
    %7 = vsyncpa [#allocation4], 0
    %8 = vsyncpa [#allocation7], 0
    %9 = vsyncpa [#allocation5], 0
    // Predicated region
    $region2: #{tpu_custom_call.1} parent=1 // pred_check
      _
    $region3: #{tpu_custom_call.1} parent=1 // pred_check_branch
      %11 = sbr.rel (0) target = $region5
    $region4: #{tpu_custom_call.1} parent=1 // pred_region
      %s13 = ssub.s32 128, 128
      %14 = vsyncadd [#allocation4], %s13
      %s16 = sshll.u32 [#allocation3], 4
      %s17 = int_to_ptr.vmem [resolvable:$true] %s16
      %19 = dma.hbm_to_vmem [thread:$0]  %s0, 128, %s17, [#allocation4]
    $region5: #{tpu_custom_call.1} parent=1 // pred_fallthru
      _
    // Predicated region
    $region6: #{tpu_custom_call.1} parent=1 // pred_check
      _
    $region7: #{tpu_custom_call.1} parent=1 // pred_check_branch
      %21 = sbr.rel (0) target = $region9
    $region8: #{tpu_custom_call.1} parent=1 // pred_region
      %s23 = ssub.s32 128, 128
      %24 = vsyncadd [#allocation7], %s23
      %s26 = sshll.u32 [#allocation6], 4
      %s27 = int_to_ptr.vmem [resolvable:$true] %s26
      %29 = dma.hbm_to_vmem [thread:$0]  %s1, 128, %s27, [#allocation7]
    $region9: #{tpu_custom_call.1} parent=1 // pred_fallthru
      _
    // Predicated region
    $region10: #{tpu_custom_call.1} parent=1 // pred_check
      _
    $region11: #{tpu_custom_call.1} parent=1 // pred_check_branch
      %31 = sbr.rel (0) target = $region13
    $region12: #{tpu_custom_call.1} parent=1 // pred_region
      %32 = dma.done [#allocation4], 128
    $region13: #{tpu_custom_call.1} parent=1 // pred_fallthru
      _
    // Predicated region
    $region14: #{tpu_custom_call.1} parent=1 // pred_check
      _
    $region15: #{tpu_custom_call.1} parent=1 // pred_check_branch
      %34 = sbr.rel (0) target = $region17
    $region16: #{tpu_custom_call.1} parent=1 // pred_region
      %35 = dma.done [#allocation7], 128
    $region17: #{tpu_custom_call.1} parent=1 // pred_fallthru
      _
    %p36 = scmp.eq.s32.totalorder 0, 0
    // Predicated region
    $region18: #{tpu_custom_call.1} parent=1 // pred_check
      %p37 = pneg %p36
    $region19: #{tpu_custom_call.1} parent=1 // pred_check_branch
      %39 = sbr.rel (%p37) target = $region21
    $region20: #{tpu_custom_call.1} parent=1 // pred_region
      %40 = vst [vmem:[#allocation2] sm:$0xff] 0.0
      %41 = vst [vmem:[#allocation2 + $0x8] sm:$0xff] 0.0
    $region21: #{tpu_custom_call.1} parent=1 // pred_fallthru
      _
    %v42 = vld [vmem:[#allocation3] sm:$0xff]
    %v43 = vld [vmem:[#allocation6] sm:$0xff]
    %v44 = vsub.f32 %v42, %v43
    %vm45 = vcmp.eq.f32.partialorder %v44, 0.0
    %v46 = vsel %vm45, 1, 0
    %v47 = vcvt.s32.f32 %v46
    %v48 = vand.u32 2147483647, %v44
    %v49 = vadd.f32 %v47, 0.0
    %v50 = vadd.f32 %v48, 0.0
    %v51 = vld [vmem:[#allocation2] sm:$0xff]
    %v52 = vadd.f32 %v51, %v49
    %53 = vst [vmem:[#allocation2] sm:$0xff] %v52
    %s54 = scalar_lea.vmem [#allocation2], 8
    %v55 = vld [vmem:[%s54] sm:$0xff]
    %v56 = vadd.f32 %v55, %v50
    %57 = vst [vmem:[%s54] sm:$0xff] %v56
    // Predicated region
    $region22: #{tpu_custom_call.1} parent=1 // pred_check
      %p58 = pneg %p36
    $region23: #{tpu_custom_call.1} parent=1 // pred_check_branch
      %60 = sbr.rel (%p58) target = $region25
    $region24: #{tpu_custom_call.1} parent=1 // pred_region
      %v61 = vld [vmem:[#allocation2] sm:$0xff]
      %62 = vadd.xlane.f32.xlu0 %v61
      %v63 = vpop.xlane.xlu0 %62
      %v64 = vrot.slane %v63, 4
      %v65 = vadd.f32 %v63, %v64
      %v66 = vrot.slane %v65, 2
      %v67 = vadd.f32 %v65, %v66
      %v68 = vrot.slane %v67, 1
      %v69 = vadd.f32 %v67, %v68
      %s70 = vtos %v69
      %s71 = ssub.f32 %s70, 952.0
      %v72 = vld [vmem:[%s54] sm:$0xff]
      %73 = vadd.xlane.f32.xlu0 %v72
      %v74 = vpop.xlane.xlu0 %73
      %v75 = vrot.slane %v74, 4
      %v76 = vadd.f32 %v74, %v75
      %v77 = vrot.slane %v76, 2
      %v78 = vadd.f32 %v76, %v77
      %v79 = vrot.slane %v78, 1
      %v80 = vadd.f32 %v78, %v79
      %s81 = vtos %v80
      %s82 = smul.f32 %s71, 0.013888889
      %s83 = scalar_lea.smem [#allocation8], 0
      %84 = sst [smem:[%s83]] %s82
      %s85 = smul.f32 %s81, 0.013888889
      %s86 = scalar_lea.smem [#allocation8], 1
      %87 = sst [smem:[%s86]] %s85
    $region25: #{tpu_custom_call.1} parent=1 // pred_fallthru
      _
    // Predicated region
    $region26: #{tpu_custom_call.1} parent=1 // pred_check
      _
    $region27: #{tpu_custom_call.1} parent=1 // pred_check_branch
      %89 = sbr.rel (0) target = $region29
    $region28: #{tpu_custom_call.1} parent=1 // pred_region
      %s91 = ssub.s32 16, 16
      %92 = vsyncadd [#allocation5], %s91
      %95 = dma.smem_to_hbm [#allocation8], 16, %s2, [#allocation5]
    $region29: #{tpu_custom_call.1} parent=1 // pred_fallthru
      _
    // Predicated region
    $region30: #{tpu_custom_call.1} parent=1 // pred_check
      _
    $region31: #{tpu_custom_call.1} parent=1 // pred_check_branch
      %97 = sbr.rel (0) target = $region33
    $region32: #{tpu_custom_call.1} parent=1 // pred_region
      %98 = dma.done [#allocation5], 16
    $region33: #{tpu_custom_call.1} parent=1 // pred_fallthru
      _
    %99 = sfence
    %100 = vsyncpa [#allocation4], 1
    %101 = vsyncpa [#allocation7], 1
    %102 = vsyncpa [#allocation5], 1

</llo_original>
